<compile_context>
chip_gen: v7x
topology: tpu7x:2x2x1
jax: 0.10.0
libtpu: 0.0.40
codegen_flags: <defaults>
</compile_context>

<pallas_src>
import functools
import math

import jax
import jax.numpy as jnp
from jax import lax
from jax.experimental import pallas as pl
from jax.experimental.pallas import tpu as pltpu


_BLOCK_BYTES_BUDGET = 2 * 1024 * 1024      # soft per-operand block budget (double-buffered)
_VMEM_LIMIT_BYTES = 32 * 1024 * 1024       # explicit scoped-VMEM limit (safe on v5e/v6e/v7x)


def _coalesce(shape, perm):
    """Merge input dims that are adjacent in the input and adjacent+in-order in the output."""
    groups = []                             # runs of input dims, in OUTPUT order
    for p in perm:
        if groups and groups[-1][-1] == p - 1:
            groups[-1].append(p)
        else:
            groups.append([p])
    order = sorted(range(len(groups)), key=lambda gi: groups[gi][0])   # input order
    new_shape = tuple(math.prod(shape[d] for d in groups[gi]) for gi in order)
    pos = {gi: k for k, gi in enumerate(order)}
    new_perm = tuple(pos[gi] for gi in range(len(groups)))
    return new_shape, new_perm


def _make_call(kernel, cshape, out_cshape, dtype, grid,
               in_block, in_index_map, out_block, out_index_map):
    nbytes = math.prod(cshape) * dtype.itemsize
    return pl.pallas_call(
        kernel,
        out_shape=jax.ShapeDtypeStruct(out_cshape, dtype),
        grid=grid,
        in_specs=[pl.BlockSpec(tuple(in_block), in_index_map)],
        out_specs=pl.BlockSpec(tuple(out_block), out_index_map),
        compiler_params=pltpu.CompilerParams(
            dimension_semantics=("parallel",) * len(grid),
            vmem_limit_bytes=_VMEM_LIMIT_BYTES),
        cost_estimate=pl.CostEstimate(
            flops=0, transcendentals=0, bytes_accessed=2 * nbytes),
    )


def _family_t(cshape, cperm, dtype):
    """Coalesced permutation swaps the last two dims (leading dims arbitrarily reordered).

    Tiled 2-D minor-most transpose: out[..., q, p] = in[..., p, q].
    """
    r = len(cshape)
    P, Q = cshape[-2], cshape[-1]
    itemsize = dtype.itemsize

    cap = 512                                # multiple of 128 -> aligned for f32/bf16/int8
    while cap > 128 and cap * cap * itemsize > _BLOCK_BYTES_BUDGET:
        cap //= 2
    tp = P if P <= cap else cap
    tq = Q if Q <= cap else cap

    out_cshape = tuple(cshape[p] for p in cperm)
    lead_out = cperm[:-2]                    # input dims sitting at output leading positions
    grid = tuple(cshape[d] for d in lead_out) + (pl.cdiv(Q, tq), pl.cdiv(P, tp))

    in_block = [None] * r
    in_block[r - 2] = tp
    in_block[r - 1] = tq
    out_block = [None] * r
    out_block[r - 2] = tq
    out_block[r - 1] = tp

    pos_of = {d: k for k, d in enumerate(cperm)}   # input dim -> output position

    def in_index_map(*g):
        idx = [g[pos_of[d]] for d in range(r - 2)]
        idx.append(g[r - 1])                 # P-tiles swept by output-minor grid axis
        idx.append(g[r - 2])                 # Q-tiles by output second-minor grid axis
        return tuple(idx)

    def out_index_map(*g):
        return g                             # grid already iterates output-major

    def kernel(x_ref, o_ref):
        o_ref[...] = x_ref[...].T            # 2-D minor-most transpose (XLU)

    return _make_call(kernel, cshape, out_cshape, dtype, grid,
                      in_block, in_index_map, out_block, out_index_map)


def _family_c(cshape, cperm, dtype):
    """Coalesced permutation keeps the lane dim last; leading dims are reordered.

    Each block folds:  E = input dim that becomes the output's second-minor dim,
                       M = the input's second-minor dim,
                       L = the shared lane dim,
    so both BlockSpecs keep full/aligned last-two dims, each grid step moves one large
    slab, and the kernel just re-orders the (E, M) axes with a short static loop of 2-D
    slab copies (no lane movement).
    """
    r = len(cshape)                          # >= 3 here
    itemsize = dtype.itemsize
    sub = {1: 32, 2: 16}.get(itemsize, 8)    # packed-dtype sublane multiple

    L = cshape[-1]
    M = cshape[r - 2]
    e = cperm[r - 2]                         # input dim -> output second-minor position
    E = cshape[e]
    j = cperm.index(r - 2)                   # output position of input dim r-2 (<= r-3)

    L_b = L if L <= 4096 else 4096           # lane-dense, multiple of 128 when tiled
    M_b = M if M <= 32 else 32               # short static in-kernel loop
    room = max(1, _BLOCK_BYTES_BUDGET // (M_b * L_b * itemsize))
    E_b = E if E <= room else min(E, max(sub, (room // sub) * sub))

    out_cshape = tuple(cshape[p] for p in cperm)

    in_block = [None] * r
    in_block[e] = E_b
    in_block[r - 2] = M_b
    in_block[r - 1] = L_b
    out_block = [None] * r
    out_block[j] = M_b
    out_block[r - 2] = E_b
    out_block[r - 1] = L_b

    grid = tuple(pl.cdiv(out_cshape[k], out_block[k] if out_block[k] is not None else 1)
                 for k in range(r))          # output-major block order -> streaming writes

    pos_of = {d: k for k, d in enumerate(cperm)}

    def in_index_map(*g):
        return tuple(g[pos_of[d]] for d in range(r))

    def out_index_map(*g):
        return g

    def kernel(x_ref, o_ref):
        # x_ref: (E_b, M_b, L_b) [input order]; o_ref: (M_b, E_b, L_b) [output order]
        for m in range(M_b):                 # static unroll, M_b <= 32
            o_ref[m, :, :] = x_ref[:, m, :]

    return _make_call(kernel, cshape, out_cshape, dtype, grid,
                      in_block, in_index_map, out_block, out_index_map)


@functools.lru_cache(maxsize=None)
def _build_permute(perm, shape, dtype_name):
    """Build (and cache) a jitted function implementing transpose(x, perm)."""
    dtype = jnp.dtype(dtype_name)
    r = len(shape)
    out_shape = tuple(shape[p] for p in perm)

    if r < 2 or perm == tuple(range(r)):
        return jax.jit(lambda x: x)

    cshape, cperm = _coalesce(shape, perm)
    cr = len(cshape)
    if cr < 2 or cperm == tuple(range(cr)):
        return jax.jit(lambda x: x)

    if cperm[-1] == cr - 2 and cperm[-2] == cr - 1:
        call = _family_t(cshape, cperm, dtype)       # tiled minor-dim transpose
    elif cperm[-1] == cr - 1:
        call = _family_c(cshape, cperm, dtype)       # leading-dim reorder copy
    else:
        # TODO(synk): permutations that move both coalesced minor dims to non-minor
        # output positions (e.g. full reversals with no coalescible runs) fall back to
        # XLA's native transpose emitter.
        return jax.jit(lambda x: lax.transpose(x, perm))

    def fn(x):
        y = call(x.reshape(cshape))
        return y.reshape(out_shape)

    return jax.jit(fn)


class PermutePallas:
    """JAX/Pallas equivalent of the PyTorch `Permute` module (forward only)."""

    def __init__(self, permutation):
        self.permutation = tuple(int(p) for p in permutation)

    def __call__(self, x):
        r = x.ndim
        perm = tuple(p % r for p in self.permutation)
        assert sorted(perm) == list(range(r)), f"invalid permutation {self.permutation}"
        fn = _build_permute(perm, tuple(int(d) for d in x.shape),
                            jnp.dtype(x.dtype).name)
        return fn(x)


if __name__ == "__main__":
    key = jax.random.PRNGKey(0)

    # Small NCHW-style feature map: batch=2, channels=4, spatial=16x16.
    x = jax.random.normal(key, (2, 4, 16, 16), dtype=jnp.float32)
    # bf16 NHWC feature map with aligned dims for the packed-dtype transpose path.
    x_bf = jax.random.normal(key, (2, 16, 16, 64), dtype=jnp.bfloat16)
    # Larger case exercising real 512x512 tiling of the minor-dim transpose.
    x_big = jax.random.normal(key, (2, 1024, 1024), dtype=jnp.float32)

    checks = [
        ("NCHW->NHWC", x, (0, 2, 3, 1)),
        ("NCHW->NWHC-ish", x, (0, 3, 1, 2)),
        ("swap H/W", x, (0, 1, 3, 2)),
        ("leading reorder", x, (1, 0, 2, 3)),
        ("bf16 NHWC->NCHW", x_bf, (0, 3, 1, 2)),
        ("big tiled transpose", x_big, (0, 2, 1)),
    ]
    for name, inp, perm in checks:
        out = PermutePallas(perm)(inp)
        jax.block_until_ready(out)
        ref = jnp.transpose(inp, perm)
        assert out.shape == ref.shape, (name, out.shape, ref.shape)
        assert jnp.array_equal(out, ref), f"mismatch vs reference for {name} perm={perm}"

    print("KERNEL_OK")
</pallas_src>

<mosaic_0001>
module attributes {stable_mosaic.version = 11 : i64} {
  func.func @kernel(%arg0: i32, %arg1: i32, %arg2: i32, %arg3: memref<1x4x256xf32, #tpu.memory_space<vmem>>, %arg4: memref<1x256x4xf32, #tpu.memory_space<vmem>>) attributes {dimension_semantics = [#tpu.dimension_semantics<parallel>, #tpu.dimension_semantics<parallel>, #tpu.dimension_semantics<parallel>], iteration_bounds = array<i64: 2, 1, 1>, scalar_prefetch = 0 : i64, scratch_operands = 0 : i64, tpu.core_type = #tpu.core_type<tc>, window_params = [{transform_indices = @transform_0, window_bounds = array<i64: 1, 4, 256>}, {transform_indices = @transform_1, window_bounds = array<i64: 1, 256, 4>}]} {
    %c0 = arith.constant 0 : index
    %c0_0 = arith.constant 0 : index
    %c0_1 = arith.constant 0 : index
    %0 = vector.load %arg3[%c0, %c0_0, %c0_1] : memref<1x4x256xf32, #tpu.memory_space<vmem>>, vector<1x4x256xf32>
    %1 = vector.shape_cast %0 : vector<1x4x256xf32> to vector<4x256xf32>
    %2 = tpu.transpose %1, [1, 0] : vector<4x256xf32> -> vector<256x4xf32>
    %c0_2 = arith.constant 0 : index
    %c0_3 = arith.constant 0 : index
    %c0_4 = arith.constant 0 : index
    %3 = vector.load %arg4[%c0_2, %c0_3, %c0_4] : memref<1x256x4xf32, #tpu.memory_space<vmem>>, vector<1x256x4xf32>
    %4 = vector.shape_cast %3 : vector<1x256x4xf32> to vector<256x4xf32>
    %5 = vector.shape_cast %2 : vector<256x4xf32> to vector<1x256x4xf32>
    tpu.vector_store %arg4[%c0_2, %c0_3, %c0_4], %5 {strides = array<i32>} : memref<1x256x4xf32, #tpu.memory_space<vmem>>, vector<1x256x4xf32>,
    return
  }
  func.func @transform_0(%arg0: i32, %arg1: i32, %arg2: i32) -> (i32, i32, i32) {
    %c0_i32 = arith.constant 0 : i32
    return %arg0, %arg2, %arg1 : i32, i32, i32
  }
  func.func @transform_1(%arg0: i32, %arg1: i32, %arg2: i32) -> (i32, i32, i32) {
    %c0_i32 = arith.constant 0 : i32
    return %arg0, %arg1, %arg2 : i32, i32, i32
  }
}

</mosaic_0001>

<llo_original>
// kernel: fn.1
$region0: #{fn.1}
  #allocation0 [shape = 'u32[]', space=smem, size = 0x4, offset = 0x4, fixed_abs, tag = 'smem constant byte address 0x4 - core index']
  #allocation1 [shape = 'u32[144,128]{1,0:T(1,128)}', space=vmem, size = 0x12000, scoped, tag = 'internal scratch']
  %s0 = inlined_call_operand.vmem [shape: f32[2,4,256], index: 0, kind: input, shape index: {}]
  %s1 = inlined_call_operand.vmem [shape: f32[2,256,4], index: 1, kind: output, shape index: {}]
  %s2 = sld [smem:[#allocation0]]
  $region37: #{fn.1} parent=0
    _
  %s4 = ssub.s32 1, %s2
  %s5 = scalar_select 0, %s4, %s2
  loop: start=0, step=1, limit=4
  $region2: #{fn.1} parent=0 // loop_pre_header
    _
  $region3: #{fn.1} parent=0 // loop_header
    %s7 = sphi 0, %s11
    %p8 = scmp.ge.s32.totalorder %s7, 4
    %s14 = sphi 0, %s33
    %s15 = sphi 0, %s29
    %s16 = sphi 0, %s25
    %s17 = sphi 0, %s14
    %s18 = sphi 0, %s15
    %s19 = sphi 0, %s16
    %s20 = sphi 0, %s17
    %s21 = sphi 0, %s18
    %s22 = sphi 0, %s19
    %s40 = sphi 0, %s42
    %s43 = sphi 0, %s40
    %s44 = sphi 0, %s43
    %s60 = sphi 0, %s44
    %s70 = sphi 0, %s72
    %s73 = sphi 0, %s70
    %s74 = sphi 0, %s73
    %s90 = sphi 0, %s74
  $region4: #{fn.1} parent=0 // loop_header_branch
    %10 = sbr.rel (%p8) target = $region8
  $region5: #{fn.1} parent=0 // loop_body
    %s12 = ssub.s32 %s7, 1
    %s13 = ssub.s32 %s7, 2
    %s23 = sadd.s32 1, %s16
    %p24 = scmp.ge.s32.totalorder %s23, 1
    %s25 = scalar_select %p24, 0, %s23
    %s26 = sadd.s32 1, %s15
    %s27 = scalar_select %p24, %s26, %s15
    %p28 = scmp.ge.s32.totalorder %s27, 1
    %s29 = scalar_select %p28, 0, %s27
    %s30 = sadd.s32 1, %s14
    %s31 = scalar_select %p28, %s30, %s14
    %p32 = scmp.ge.s32.totalorder %s31, 2
    %s33 = scalar_select %p32, 0, %s31
    %s34 = ssub.s32 %s14, %s33
    %s35 = ssub.s32 %s16, %s25
    %s36 = sor.u32 %s34, %s35
    %s37 = ssub.s32 %s15, %s29
    %s38 = sor.u32 %s36, %s37
    %p39 = scmp.eq.s32.totalorder %s38, 0
    %s41 = sadd.s32 %s40, 1
    %s42 = scalar_select %p39, %s40, %s41
    %p45 = pneg %p39
    %p46 = scmp.eq.s32.totalorder %s7, 1
    %p47 = por %p45, %p46
    %p48 = scmp.ne.s32.totalorder %s40, %s43
    %p49 = scmp.eq.s32.totalorder %s7, 0
    %p50 = por %p48, %p49
    %p51 = scmp.ne.s32.totalorder %s40, %s43
    %p52 = scmp.eq.s32.totalorder %s12, 1
    %p53 = por %p51, %p52
    %p54 = scmp.ne.s32.totalorder %s43, %s44
    %p55 = scmp.eq.s32.totalorder %s12, 0
    %p56 = por %p54, %p55
    %p57 = scmp.ne.s32.totalorder %s43, %s44
    %p58 = scmp.eq.s32.totalorder %s13, 1
    %p59 = por %p57, %p58
    %p61 = scmp.ne.s32.totalorder %s44, %s60
    %p62 = scmp.eq.s32.totalorder %s13, 0
    %p63 = por %p61, %p62
    %s64 = ssub.s32 %s14, %s33
    %s65 = ssub.s32 %s15, %s29
    %s66 = sor.u32 %s64, %s65
    %s67 = ssub.s32 %s16, %s25
    %s68 = sor.u32 %s66, %s67
    %p69 = scmp.eq.s32.totalorder %s68, 0
    %s71 = sadd.s32 %s70, 1
    %s72 = scalar_select %p69, %s70, %s71
    %p75 = pneg %p69
    %p76 = scmp.eq.s32.totalorder %s7, 1
    %p77 = por %p75, %p76
    %p78 = scmp.ne.s32.totalorder %s70, %s73
    %p79 = scmp.eq.s32.totalorder %s7, 0
    %p80 = por %p78, %p79
    %p81 = scmp.ne.s32.totalorder %s70, %s73
    %p82 = scmp.eq.s32.totalorder %s12, 1
    %p83 = por %p81, %p82
    %p84 = scmp.ne.s32.totalorder %s73, %s74
    %p85 = scmp.eq.s32.totalorder %s12, 0
    %p86 = por %p84, %p85
    %p87 = scmp.ne.s32.totalorder %s73, %s74
    %p88 = scmp.eq.s32.totalorder %s13, 1
    %p89 = por %p87, %p88
    %p91 = scmp.ne.s32.totalorder %s74, %s90
    %p92 = scmp.eq.s32.totalorder %s13, 0
    %p93 = por %p91, %p92
    %p94 = scmp.le.s32.totalorder 1, %s7
    %p95 = scmp.lt.s32.totalorder %s7, 3
    %p96 = pnand %p94, %p95
    %p97 = pneg %p96
    // Predicated region
    $region9: #{fn.1} parent=5 // pred_check
      _
    $region10: #{fn.1} parent=5 // pred_check_branch
      %99 = sbr.rel (%p96) target = $region12
    $region11: #{fn.1} parent=5 // pred_region
      %s100 = ssub.s32 %s7, 1
    $region12: #{fn.1} parent=5 // pred_fallthru
      _
    %p101 = scmp.lt.s32.totalorder %s7, 2
    // Predicated region
    $region13: #{fn.1} parent=5 // pred_check
      %p102 = pneg %p101
    $region14: #{fn.1} parent=5 // pred_check_branch
      %104 = sbr.rel (%p102) target = $region16
    $region15: #{fn.1} parent=5 // pred_region
      // Predicated region
      $region17: #{fn.1} parent=15 // pred_check
        %p105 = pneg %p50
      $region18: #{fn.1} parent=15 // pred_check_branch
        %107 = sbr.rel (%p105) target = $region20
      $region19: #{fn.1} parent=15 // pred_region
        %s108 = smul.u32 2, %s15
        %p109 = scmp.lt.s32.totalorder %s14, 1
        %s110 = scalar_select %p109, %s14, 1
        %p111 = scmp.lt.s32.totalorder %s16, 0
        %s112 = scalar_select %p111, %s16, 0
        %p113 = scmp.lt.s32.totalorder %s108, 1
        %s114 = scalar_select %p113, %s108, 1
        %s115 = smul.addr %s112, 2
        %s116 = sadd.s32 %s114, %s115
        %s117 = smul.addr %s110, 2
        %s118 = sadd.s32 %s116, %s117
        %s119 = smul.addr %s118, 4
        %s120 = scalar_lea.vmem %s0, %s119
        %s121 = smul.u32 2, %s15
      $region20: #{fn.1} parent=15 // pred_fallthru
        _
    $region16: #{fn.1} parent=5 // pred_fallthru
      _
    %p122 = scmp.le.s32.totalorder 1, %s7
    %p123 = scmp.lt.s32.totalorder %s7, 3
    %p124 = pnand %p122, %p123
    %p125 = pneg %p124
    // Predicated region
    $region21: #{fn.1} parent=5 // pred_check
      _
    $region22: #{fn.1} parent=5 // pred_check_branch
      %127 = sbr.rel (%p124) target = $region24
    $region23: #{fn.1} parent=5 // pred_region
      %s128 = ssub.s32 %s7, 1
      %s129 = smul.u32 2, %s18
      %p130 = scmp.lt.s32.totalorder %s17, 1
      %s131 = scalar_select %p130, %s17, 1
      %p132 = scmp.lt.s32.totalorder %s19, 0
      %s133 = scalar_select %p132, %s19, 0
      %p134 = scmp.lt.s32.totalorder %s129, 1
      %s135 = scalar_select %p134, %s129, 1
      %s136 = smul.addr %s133, 2
      %s137 = sadd.s32 %s135, %s136
      %s138 = smul.addr %s131, 2
      %s139 = sadd.s32 %s137, %s138
      %s140 = smul.addr %s139, 4
      %s141 = scalar_lea.vmem %s0, %s140
      %p142 = pneg %p56
      %p143 = pneg %p53
      %p144 = pneg %p86
      %p145 = pneg %p83
      %s146 = smul.u32 32, %s18
      %p147 = scmp.lt.s32.totalorder %s17, 1
      %s148 = scalar_select %p147, %s17, 1
      %p149 = scmp.lt.s32.totalorder %s146, 31
      %s150 = scalar_select %p149, %s146, 31
      %p151 = scmp.lt.s32.totalorder %s19, 0
      %s152 = scalar_select %p151, %s19, 0
      %s153 = sadd.s32 %s152, %s150
      %s154 = smul.addr %s148, 32
      %s155 = sadd.s32 %s153, %s154
      %s156 = smul.addr %s155, 8
      %s157 = scalar_lea.vmem %s1, %s156
      %s158 = smul.u32 2, %s18
      %p159 = scmp.lt.s32.totalorder %s17, 1
      %s160 = scalar_select %p159, %s17, 1
      %p161 = scmp.lt.s32.totalorder %s19, 0
      %s162 = scalar_select %p161, %s19, 0
      %p163 = scmp.lt.s32.totalorder %s158, 1
      %s164 = scalar_select %p163, %s158, 1
      %s165 = smul.addr %s162, 2
      %s166 = sadd.s32 %s164, %s165
      %s167 = smul.addr %s160, 2
      %s168 = sadd.s32 %s166, %s167
      %s169 = smul.addr %s168, 4
      %s170 = scalar_lea.vmem %s0, %s169
      %s171 = smul.u32 2, %s18
      %s172 = smul.u32 32, %s18
      %p173 = scmp.lt.s32.totalorder %s17, 1
      %s174 = scalar_select %p173, %s17, 1
      %p175 = scmp.lt.s32.totalorder %s172, 31
      %s176 = scalar_select %p175, %s172, 31
      %p177 = scmp.lt.s32.totalorder %s19, 0
      %s178 = scalar_select %p177, %s19, 0
      %s179 = sadd.s32 %s178, %s176
      %s180 = smul.addr %s174, 32
      %s181 = sadd.s32 %s179, %s180
      %s182 = smul.addr %s181, 8
      %s183 = scalar_lea.vmem %s1, %s182
      %s184 = smul.u32 32, %s18
      %v185 = vld [vmem:[%s170] sm:$0xff]
      %v187 = vcombine.high %v185, %v185
      %189 = vxpose.xlu0.b32.start [1/16] %v185, 128
      %190 = vxpose.xlu0.b32.cont [2/16] 0.0, 128
      %191 = vxpose.xlu0.b32.cont [3/16] 0.0, 128
      %192 = vxpose.xlu0.b32.cont [4/16] 0.0, 128
      %193 = vxpose.xlu0.b32.cont [5/16] 0.0, 128
      %194 = vxpose.xlu0.b32.cont [6/16] 0.0, 128
      %195 = vxpose.xlu0.b32.cont [7/16] 0.0, 128
      %196 = vxpose.xlu0.b32.cont [8/16] 0.0, 128
      %197 = vxpose.xlu0.b32.cont [9/16] 0.0, 128
      %198 = vxpose.xlu0.b32.cont [10/16] 0.0, 128
      %199 = vxpose.xlu0.b32.cont [11/16] 0.0, 128
      %200 = vxpose.xlu0.b32.cont [12/16] 0.0, 128
      %201 = vxpose.xlu0.b32.cont [13/16] 0.0, 128
      %202 = vxpose.xlu0.b32.cont [14/16] 0.0, 128
      %203 = vxpose.xlu0.b32.cont [15/16] 0.0, 128
      %204 = vxpose.xlu0.b32.end [16/16] 0.0, 128
      %v205 = vpop.trf.xlu0
      %v206 = vpop.trf.xlu0
      %v207 = vpop.trf.xlu0
      %v208 = vpop.trf.xlu0
      %v209 = vpop.trf.xlu0
      %v210 = vpop.trf.xlu0
      %v211 = vpop.trf.xlu0
      %v212 = vpop.trf.xlu0
      %v213 = vpop.trf.xlu0
      %v214 = vpop.trf.xlu0
      %v215 = vpop.trf.xlu0
      %v216 = vpop.trf.xlu0
      %v217 = vpop.trf.xlu0
      %v218 = vpop.trf.xlu0
      %v219 = vpop.trf.xlu0
      %v220 = vpop.trf.xlu0
      %221 = vxpose.xlu0.b32.start [1/16] %v187, 128
      %222 = vxpose.xlu0.b32.cont [2/16] 0.0, 128
      %223 = vxpose.xlu0.b32.cont [3/16] 0.0, 128
      %224 = vxpose.xlu0.b32.cont [4/16] 0.0, 128
      %225 = vxpose.xlu0.b32.cont [5/16] 0.0, 128
      %226 = vxpose.xlu0.b32.cont [6/16] 0.0, 128
      %227 = vxpose.xlu0.b32.cont [7/16] 0.0, 128
      %228 = vxpose.xlu0.b32.cont [8/16] 0.0, 128
      %229 = vxpose.xlu0.b32.cont [9/16] 0.0, 128
      %230 = vxpose.xlu0.b32.cont [10/16] 0.0, 128
      %231 = vxpose.xlu0.b32.cont [11/16] 0.0, 128
      %232 = vxpose.xlu0.b32.cont [12/16] 0.0, 128
      %233 = vxpose.xlu0.b32.cont [13/16] 0.0, 128
      %234 = vxpose.xlu0.b32.cont [14/16] 0.0, 128
      %235 = vxpose.xlu0.b32.cont [15/16] 0.0, 128
      %236 = vxpose.xlu0.b32.end [16/16] 0.0, 128
      %v237 = vpop.trf.xlu0
      %v238 = vpop.trf.xlu0
      %v239 = vpop.trf.xlu0
      %v240 = vpop.trf.xlu0
      %v241 = vpop.trf.xlu0
      %v242 = vpop.trf.xlu0
      %v243 = vpop.trf.xlu0
      %v244 = vpop.trf.xlu0
      %v245 = vpop.trf.xlu0
      %v246 = vpop.trf.xlu0
      %v247 = vpop.trf.xlu0
      %v248 = vpop.trf.xlu0
      %v249 = vpop.trf.xlu0
      %v250 = vpop.trf.xlu0
      %v251 = vpop.trf.xlu0
      %v252 = vpop.trf.xlu0
      %vm253 = vcmask 31744
      %254 = vst.msk [vmem:[%s183] sm:$0xff] %vm253, %v205
      %255 = vst.msk [vmem:[%s183 + $0x8] sm:$0xff] %vm253, %v206
      %256 = vst.msk [vmem:[%s183 + $0x10] sm:$0xff] %vm253, %v207
      %257 = vst.msk [vmem:[%s183 + $0x18] sm:$0xff] %vm253, %v208
      %258 = vst.msk [vmem:[%s183 + $0x20] sm:$0xff] %vm253, %v209
      %259 = vst.msk [vmem:[%s183 + $0x28] sm:$0xff] %vm253, %v210
      %260 = vst.msk [vmem:[%s183 + $0x30] sm:$0xff] %vm253, %v211
      %261 = vst.msk [vmem:[%s183 + $0x38] sm:$0xff] %vm253, %v212
      %262 = vst.msk [vmem:[%s183 + $0x40] sm:$0xff] %vm253, %v213
      %263 = vst.msk [vmem:[%s183 + $0x48] sm:$0xff] %vm253, %v214
      %264 = vst.msk [vmem:[%s183 + $0x50] sm:$0xff] %vm253, %v215
      %265 = vst.msk [vmem:[%s183 + $0x58] sm:$0xff] %vm253, %v216
      %266 = vst.msk [vmem:[%s183 + $0x60] sm:$0xff] %vm253, %v217
      %267 = vst.msk [vmem:[%s183 + $0x68] sm:$0xff] %vm253, %v218
      %268 = vst.msk [vmem:[%s183 + $0x70] sm:$0xff] %vm253, %v219
      %269 = vst.msk [vmem:[%s183 + $0x78] sm:$0xff] %vm253, %v220
      %270 = vst.msk [vmem:[%s183 + $0x80] sm:$0xff] %vm253, %v237
      %271 = vst.msk [vmem:[%s183 + $0x88] sm:$0xff] %vm253, %v238
      %272 = vst.msk [vmem:[%s183 + $0x90] sm:$0xff] %vm253, %v239
      %273 = vst.msk [vmem:[%s183 + $0x98] sm:$0xff] %vm253, %v240
      %274 = vst.msk [vmem:[%s183 + $0xa0] sm:$0xff] %vm253, %v241
      %275 = vst.msk [vmem:[%s183 + $0xa8] sm:$0xff] %vm253, %v242
      %276 = vst.msk [vmem:[%s183 + $0xb0] sm:$0xff] %vm253, %v243
      %277 = vst.msk [vmem:[%s183 + $0xb8] sm:$0xff] %vm253, %v244
      %278 = vst.msk [vmem:[%s183 + $0xc0] sm:$0xff] %vm253, %v245
      %279 = vst.msk [vmem:[%s183 + $0xc8] sm:$0xff] %vm253, %v246
      %280 = vst.msk [vmem:[%s183 + $0xd0] sm:$0xff] %vm253, %v247
      %281 = vst.msk [vmem:[%s183 + $0xd8] sm:$0xff] %vm253, %v248
      %282 = vst.msk [vmem:[%s183 + $0xe0] sm:$0xff] %vm253, %v249
      %283 = vst.msk [vmem:[%s183 + $0xe8] sm:$0xff] %vm253, %v250
      %284 = vst.msk [vmem:[%s183 + $0xf0] sm:$0xff] %vm253, %v251
      %285 = vst.msk [vmem:[%s183 + $0xf8] sm:$0xff] %vm253, %v252
      %s286 = smul.u32 32, %s18
      %p287 = scmp.lt.s32.totalorder %s17, 1
      %s288 = scalar_select %p287, %s17, 1
      %p289 = scmp.lt.s32.totalorder %s286, 31
      %s290 = scalar_select %p289, %s286, 31
      %p291 = scmp.lt.s32.totalorder %s19, 0
      %s292 = scalar_select %p291, %s19, 0
      %s293 = sadd.s32 %s292, %s290
      %s294 = smul.addr %s288, 32
      %s295 = sadd.s32 %s293, %s294
      %s296 = smul.addr %s295, 8
      %s297 = scalar_lea.vmem %s1, %s296
      // Predicated region
      $region25: #{fn.1} parent=23 // pred_check
        %p298 = pneg %p83
      $region26: #{fn.1} parent=23 // pred_check_branch
        %300 = sbr.rel (%p298) target = $region28
      $region27: #{fn.1} parent=23 // pred_region
        %s301 = smul.u32 32, %s18
      $region28: #{fn.1} parent=23 // pred_fallthru
        _
    $region24: #{fn.1} parent=5 // pred_fallthru
      _
    %p302 = scmp.le.s32.totalorder 2, %s7
    // Predicated region
    $region29: #{fn.1} parent=5 // pred_check
      %p303 = pneg %p302
    $region30: #{fn.1} parent=5 // pred_check_branch
      %305 = sbr.rel (%p303) target = $region32
    $region31: #{fn.1} parent=5 // pred_region
      %s306 = ssub.s32 %s7, 2
      // Predicated region
      $region33: #{fn.1} parent=31 // pred_check
        %p307 = pneg %p89
      $region34: #{fn.1} parent=31 // pred_check_branch
        %309 = sbr.rel (%p307) target = $region36
      $region35: #{fn.1} parent=31 // pred_region
        %s310 = smul.u32 32, %s21
        %p311 = scmp.lt.s32.totalorder %s20, 1
        %s312 = scalar_select %p311, %s20, 1
        %p313 = scmp.lt.s32.totalorder %s310, 31
        %s314 = scalar_select %p313, %s310, 31
        %p315 = scmp.lt.s32.totalorder %s22, 0
        %s316 = scalar_select %p315, %s22, 0
        %s317 = sadd.s32 %s316, %s314
        %s318 = smul.addr %s312, 32
        %s319 = sadd.s32 %s317, %s318
        %s320 = smul.addr %s319, 8
        %s321 = scalar_lea.vmem %s1, %s320
      $region36: #{fn.1} parent=31 // pred_fallthru
        _
    $region32: #{fn.1} parent=5 // pred_fallthru
      _
  $region6: #{fn.1} parent=0 // loop_footer
    %s11 = sadd.s32 1, %s7
  $region7: #{fn.1} parent=0 // loop_footer_branch
    %6 = sbr.rel target = $region3
  $region8: #{fn.1} parent=0 // loop_exit
    _

</llo_original>
